<compile_context>
chip_gen: v7x
topology: tpu7x:2x2x1
jax: 0.10.0
libtpu: 0.0.40
codegen_flags: <defaults>
</compile_context>

<pallas_src>
import math

import jax
import jax.numpy as jnp
from jax.experimental import pallas as pl
from jax.experimental.pallas import tpu as pltpu

LANE = 128


def rff_block_kernel(x_ref, freqs_ref, w1s_ref, w1c_ref, b1_ref, w2_ref, b2_ref, o_ref):
    x = x_ref[...]                                   # [tb, input_dim]

    # RFF projection. 2*pi is already folded into freqs.
    if x.shape[1] == 1:
        # Degenerate K=1 contraction: do it on the VPU as a broadcast outer product
        # instead of paying the MXU push/pop + layout round-trip.
        t = x * freqs_ref[...]                       # [tb,1] * [1,rff] -> [tb, rff]
    else:
        t = jnp.dot(x, freqs_ref[...], preferred_element_type=jnp.float32)

    sin_t = jnp.sin(t)
    cos_t = jnp.cos(t)

    # MLP layer 1 + ReLU.  W1 pre-split into sin/cos halves -> no lane-axis concat.
    h = (
        jnp.dot(sin_t, w1s_ref[...], preferred_element_type=jnp.float32)
        + jnp.dot(cos_t, w1c_ref[...], preferred_element_type=jnp.float32)
        + b1_ref[...]
    )
    h = jnp.maximum(h, 0.0)

    # MLP layer 2 + final ReLU (last_non_linearity in the reference module).
    y = jnp.dot(h, w2_ref[...], preferred_element_type=jnp.float32) + b2_ref[...]
    o_ref[...] = jnp.maximum(y, 0.0)


def prepare_rff_params(freqs, w1, b1, w2, b2, *, lane=LANE):
    """One-time host-side transform of the (fixed / trained) parameters.

    - folds 2*pi into the non-trainable RFF frequency buffer
    - splits W1 into sin/cos halves (kills the in-kernel concat)
    - zero-pads H1 and H2 up to a multiple of 128 lanes (semantics preserved)
    """
    rff_dim = freqs.shape[1]
    h1 = w1.shape[1]
    h2 = w2.shape[1]
    h1p = max(lane, pl.cdiv(h1, lane) * lane)
    h2p = max(lane, pl.cdiv(h2, lane) * lane)

    freqs_scaled = (2.0 * math.pi) * freqs
    w1s = jnp.pad(w1[:rff_dim], ((0, 0), (0, h1p - h1)))
    w1c = jnp.pad(w1[rff_dim:], ((0, 0), (0, h1p - h1)))
    b1p = jnp.pad(b1, ((0, 0), (0, h1p - h1)))
    w2p = jnp.pad(w2, ((0, h1p - h1), (0, h2p - h2)))
    b2p = jnp.pad(b2, ((0, 0), (0, h2p - h2)))
    return {
        "freqs": freqs_scaled,
        "w1s": w1s,
        "w1c": w1c,
        "b1": b1p,
        "w2": w2p,
        "b2": b2p,
        "h2": h2,
    }


def _pick_tile(B, target=1024):
    """Largest batch tile <= target that divides B and is sublane-aligned."""
    if B <= target:
        return B
    for tb in range(target, 7, -8):   # multiples of 8 only
        if B % tb == 0:
            return tb
    return B


def rff_block(std_step, params, *, tb=None):
    B, input_dim = std_step.shape
    freqs, w1s, w1c, b1, w2, b2 = (
        params["freqs"], params["w1s"], params["w1c"],
        params["b1"], params["w2"], params["b2"],
    )
    rff_dim = freqs.shape[1]
    h1p = w1s.shape[1]
    h2p = w2.shape[1]
    h2 = params["h2"]

    if tb is None:
        tb = _pick_tile(B)
    assert B % tb == 0, "batch tile must divide batch"
    assert tb % 8 == 0 or tb == B, "batch tile must be sublane-aligned (x8) or full batch"

    grid = (B // tb,)
    out = pl.pallas_call(
        rff_block_kernel,
        out_shape=jax.ShapeDtypeStruct((B, h2p), jnp.float32),
        grid_spec=pltpu.PrefetchScalarGridSpec(
            num_scalar_prefetch=0,
            grid=grid,
            in_specs=[
                pl.BlockSpec((tb, input_dim), lambda i: (i, 0)),        # std_step tile
                pl.BlockSpec((input_dim, rff_dim), lambda i: (0, 0)),   # 2*pi*RFF freqs
                pl.BlockSpec((rff_dim, h1p), lambda i: (0, 0)),         # W1 sin half
                pl.BlockSpec((rff_dim, h1p), lambda i: (0, 0)),         # W1 cos half
                pl.BlockSpec((1, h1p), lambda i: (0, 0)),               # b1 (padded)
                pl.BlockSpec((h1p, h2p), lambda i: (0, 0)),             # W2 (padded)
                pl.BlockSpec((1, h2p), lambda i: (0, 0)),               # b2 (padded)
            ],
            out_specs=pl.BlockSpec((tb, h2p), lambda i: (i, 0)),        # lane-dense output
        ),
        compiler_params=pltpu.CompilerParams(
            dimension_semantics=("parallel",),
        ),
    )(std_step, freqs, w1s, w1c, b1, w2, b2)
    return out[:, :h2]


def rff_block_ref(std_step, freqs, w1, b1, w2, b2):
    t = 2.0 * math.pi * jnp.einsum("bi,ij->bj", std_step, freqs)
    emb = jnp.concatenate([jnp.sin(t), jnp.cos(t)], axis=-1)
    h = jnp.maximum(emb @ w1 + b1, 0.0)
    return jnp.maximum(h @ w2 + b2, 0.0)


if __name__ == "__main__":
    # Module hyperparameters (small, consistent with the PyTorch defaults)
    input_dim = 1
    rff_dim = 32                 # embedding dim = 2 * rff_dim = 64
    mlp_hidden_dims = [64, 32]   # after insert(0, 2*rff_dim): [64, 64, 32]
    H1, H2 = mlp_hidden_dims
    B = 8

    key = jax.random.PRNGKey(0)
    k_x, k_f, k_w1, k_b1, k_w2, k_b2 = jax.random.split(key, 6)

    std_step = jax.random.uniform(k_x, (B, input_dim), dtype=jnp.float32)

    # Deterministic parameter init (synthetic; shapes from the module __init__)
    freqs = 16.0 * jax.random.normal(k_f, (input_dim, rff_dim), dtype=jnp.float32)
    w1 = 0.1 * jax.random.normal(k_w1, (2 * rff_dim, H1), dtype=jnp.float32)
    b1 = 0.1 * jax.random.normal(k_b1, (1, H1), dtype=jnp.float32)
    w2 = 0.1 * jax.random.normal(k_w2, (H1, H2), dtype=jnp.float32)
    b2 = 0.1 * jax.random.normal(k_b2, (1, H2), dtype=jnp.float32)

    # One-time parameter prep (2*pi fold, W1 split, lane padding)
    params = prepare_rff_params(freqs, w1, b1, w2, b2)

    out = rff_block(std_step, params)
    out = jax.block_until_ready(out)

    ref = jax.block_until_ready(rff_block_ref(std_step, freqs, w1, b1, w2, b2))
    assert out.shape == (B, H2)
    assert jnp.allclose(out, ref, atol=1e-4, rtol=1e-4), "mismatch vs reference"

    print("KERNEL_OK")
</pallas_src>

<mosaic_0001>
module attributes {stable_mosaic.version = 11 : i64} {
  func.func @rff_block_kernel(%arg0: i32, %arg1: memref<8x1xf32, #tpu.memory_space<vmem>>, %arg2: memref<1x32xf32, #tpu.memory_space<vmem>>, %arg3: memref<32x128xf32, #tpu.memory_space<vmem>>, %arg4: memref<32x128xf32, #tpu.memory_space<vmem>>, %arg5: memref<1x128xf32, #tpu.memory_space<vmem>>, %arg6: memref<128x128xf32, #tpu.memory_space<vmem>>, %arg7: memref<1x128xf32, #tpu.memory_space<vmem>>, %arg8: memref<8x128xf32, #tpu.memory_space<vmem>>) attributes {dimension_semantics = [#tpu.dimension_semantics<parallel>], iteration_bounds = array<i64: 1>, scalar_prefetch = 0 : i64, scratch_operands = 0 : i64, tpu.core_type = #tpu.core_type<tc>, window_params = [{transform_indices = @transform_0, window_bounds = array<i64: 8, 1>}, {pipeline_mode = #tpu.pipeline_mode<synchronous>, transform_indices = @transform_1, window_bounds = array<i64: 1, 32>}, {pipeline_mode = #tpu.pipeline_mode<synchronous>, transform_indices = @transform_2, window_bounds = array<i64: 32, 128>}, {pipeline_mode = #tpu.pipeline_mode<synchronous>, transform_indices = @transform_3, window_bounds = array<i64: 32, 128>}, {pipeline_mode = #tpu.pipeline_mode<synchronous>, transform_indices = @transform_4, window_bounds = array<i64: 1, 128>}, {pipeline_mode = #tpu.pipeline_mode<synchronous>, transform_indices = @transform_5, window_bounds = array<i64: 128, 128>}, {pipeline_mode = #tpu.pipeline_mode<synchronous>, transform_indices = @transform_6, window_bounds = array<i64: 1, 128>}, {transform_indices = @transform_7, window_bounds = array<i64: 8, 128>}]} {
    %c0 = arith.constant 0 : index
    %c0_0 = arith.constant 0 : index
    %0 = vector.load %arg1[%c0, %c0_0] : memref<8x1xf32, #tpu.memory_space<vmem>>, vector<8x1xf32>
    %c0_1 = arith.constant 0 : index
    %c0_2 = arith.constant 0 : index
    %1 = vector.load %arg2[%c0_1, %c0_2] : memref<1x32xf32, #tpu.memory_space<vmem>>, vector<1x32xf32>
    %2 = vector.broadcast %0 : vector<8x1xf32> to vector<8x32xf32>
    %3 = vector.broadcast %1 : vector<1x32xf32> to vector<8x32xf32>
    %4 = arith.mulf %2, %3 : vector<8x32xf32>
    %5 = math.sin %4 : vector<8x32xf32>
    %6 = math.cos %4 : vector<8x32xf32>
    %c0_3 = arith.constant 0 : index
    %c0_4 = arith.constant 0 : index
    %7 = vector.load %arg3[%c0_3, %c0_4] : memref<32x128xf32, #tpu.memory_space<vmem>>, vector<32x128xf32>
    %cst = arith.constant dense<0.000000e+00> : vector<8x128xf32>
    %8 = tpu.matmul %5, %7, %cst {dimension_numbers = #tpu.dot_dimension_numbers<[1], [0], [0], [1], [0, 0, 1, 1], [], []>} : vector<8x32xf32>, vector<32x128xf32>, vector<8x128xf32> -> vector<8x128xf32>
    %c0_5 = arith.constant 0 : index
    %c0_6 = arith.constant 0 : index
    %9 = vector.load %arg4[%c0_5, %c0_6] : memref<32x128xf32, #tpu.memory_space<vmem>>, vector<32x128xf32>
    %cst_7 = arith.constant dense<0.000000e+00> : vector<8x128xf32>
    %10 = tpu.matmul %6, %9, %cst_7 {dimension_numbers = #tpu.dot_dimension_numbers<[1], [0], [0], [1], [0, 0, 1, 1], [], []>} : vector<8x32xf32>, vector<32x128xf32>, vector<8x128xf32> -> vector<8x128xf32>
    %11 = arith.addf %8, %10 : vector<8x128xf32>
    %c0_8 = arith.constant 0 : index
    %c0_9 = arith.constant 0 : index
    %12 = vector.load %arg5[%c0_8, %c0_9] : memref<1x128xf32, #tpu.memory_space<vmem>>, vector<1x128xf32>
    %13 = vector.broadcast %12 : vector<1x128xf32> to vector<8x128xf32>
    %14 = arith.addf %11, %13 : vector<8x128xf32>
    %cst_10 = arith.constant 0.000000e+00 : f32
    %15 = vector.broadcast %cst_10 : f32 to vector<8x128xf32>
    %16 = arith.maximumf %14, %15 : vector<8x128xf32>
    %c0_11 = arith.constant 0 : index
    %c0_12 = arith.constant 0 : index
    %17 = vector.load %arg6[%c0_11, %c0_12] : memref<128x128xf32, #tpu.memory_space<vmem>>, vector<128x128xf32>
    %cst_13 = arith.constant dense<0.000000e+00> : vector<8x128xf32>
    %18 = tpu.matmul %16, %17, %cst_13 {dimension_numbers = #tpu.dot_dimension_numbers<[1], [0], [0], [1], [0, 0, 1, 1], [], []>} : vector<8x128xf32>, vector<128x128xf32>, vector<8x128xf32> -> vector<8x128xf32>
    %c0_14 = arith.constant 0 : index
    %c0_15 = arith.constant 0 : index
    %19 = vector.load %arg7[%c0_14, %c0_15] : memref<1x128xf32, #tpu.memory_space<vmem>>, vector<1x128xf32>
    %20 = vector.broadcast %19 : vector<1x128xf32> to vector<8x128xf32>
    %21 = arith.addf %18, %20 : vector<8x128xf32>
    %cst_16 = arith.constant 0.000000e+00 : f32
    %22 = vector.broadcast %cst_16 : f32 to vector<8x128xf32>
    %23 = arith.maximumf %21, %22 : vector<8x128xf32>
    %c0_17 = arith.constant 0 : index
    %c0_18 = arith.constant 0 : index
    %24 = vector.load %arg8[%c0_17, %c0_18] : memref<8x128xf32, #tpu.memory_space<vmem>>, vector<8x128xf32>
    tpu.vector_store %arg8[%c0_17, %c0_18], %23 {strides = array<i32>} : memref<8x128xf32, #tpu.memory_space<vmem>>, vector<8x128xf32>,
    return
  }
  func.func @transform_0(%arg0: i32) -> (i32, i32) {
    %c0_i32 = arith.constant 0 : i32
    %c0_i32_0 = arith.constant 0 : i32
    return %arg0, %c0_i32 : i32, i32
  }
  func.func @transform_1(%arg0: i32) -> (i32, i32) {
    %c0_i32 = arith.constant 0 : i32
    %c0_i32_0 = arith.constant 0 : i32
    %c0_i32_1 = arith.constant 0 : i32
    return %c0_i32, %c0_i32_0 : i32, i32
  }
  func.func @transform_2(%arg0: i32) -> (i32, i32) {
    %c0_i32 = arith.constant 0 : i32
    %c0_i32_0 = arith.constant 0 : i32
    %c0_i32_1 = arith.constant 0 : i32
    return %c0_i32, %c0_i32_0 : i32, i32
  }
  func.func @transform_3(%arg0: i32) -> (i32, i32) {
    %c0_i32 = arith.constant 0 : i32
    %c0_i32_0 = arith.constant 0 : i32
    %c0_i32_1 = arith.constant 0 : i32
    return %c0_i32, %c0_i32_0 : i32, i32
  }
  func.func @transform_4(%arg0: i32) -> (i32, i32) {
    %c0_i32 = arith.constant 0 : i32
    %c0_i32_0 = arith.constant 0 : i32
    %c0_i32_1 = arith.constant 0 : i32
    return %c0_i32, %c0_i32_0 : i32, i32
  }
  func.func @transform_5(%arg0: i32) -> (i32, i32) {
    %c0_i32 = arith.constant 0 : i32
    %c0_i32_0 = arith.constant 0 : i32
    %c0_i32_1 = arith.constant 0 : i32
    return %c0_i32, %c0_i32_0 : i32, i32
  }
  func.func @transform_6(%arg0: i32) -> (i32, i32) {
    %c0_i32 = arith.constant 0 : i32
    %c0_i32_0 = arith.constant 0 : i32
    %c0_i32_1 = arith.constant 0 : i32
    return %c0_i32, %c0_i32_0 : i32, i32
  }
  func.func @transform_7(%arg0: i32) -> (i32, i32) {
    %c0_i32 = arith.constant 0 : i32
    %c0_i32_0 = arith.constant 0 : i32
    return %arg0, %c0_i32 : i32, i32
  }
}

</mosaic_0001>

<llo_original>
// kernel: tpu_custom_call.1
$region0: #{tpu_custom_call.1}
  #allocation0 [shape = 'u32[]', space=smem, size = 0x4, offset = 0x4, fixed_abs, tag = 'smem constant byte address 0x4 - core index']
  #allocation1 [shape = 'u32[144,128]{1,0:T(1,128)}', space=vmem, size = 0x12000, scoped, tag = 'internal scratch']
  %s0 = inlined_call_operand.vmem [shape: f32[8,1], index: 0, kind: input, shape index: {}]
  %s1 = inlined_call_operand.vmem [shape: f32[1,32], index: 1, kind: input, shape index: {}]
  %s2 = inlined_call_operand.hbm [shape: f32[32,128], index: 2, kind: input, shape index: {}]
  %s3 = inlined_call_operand.hbm [shape: f32[32,128], index: 3, kind: input, shape index: {}]
  %s4 = inlined_call_operand.vmem [shape: f32[1,128], index: 4, kind: input, shape index: {}]
  %s5 = inlined_call_operand.hbm [shape: f32[128,128], index: 5, kind: input, shape index: {}]
  %s6 = inlined_call_operand.vmem [shape: f32[1,128], index: 6, kind: input, shape index: {}]
  %s7 = inlined_call_operand.hbm [shape: f32[8,128], index: 7, kind: output, shape index: {}]
  %s8 = sld [smem:[#allocation0]]
  $region50: #{tpu_custom_call.1} parent=0
    _
  %s10 = ssub.s32 1, %s8
  %s11 = scalar_select 0, %s10, %s8
  $region1: #{tpu_custom_call.1} parent=0
    #allocation2 [shape = 'u8[16384]{0}', space=vmem, size = 0x4000, scoped, tag = 'input window, operand 2, single buffered']
    #allocation3 [shape = 's32[1]{0}', space=sflag, size = 0x4, scoped, tag = 'scoped memory for tpu_custom_call.1']
    #allocation4 [shape = 's32[1]{0}', space=sflag, size = 0x4, scoped, tag = 'scoped memory for tpu_custom_call.1']
    #allocation5 [shape = 'u8[16384]{0}', space=vmem, size = 0x4000, scoped, tag = 'input window, operand 3, single buffered']
    #allocation6 [shape = 's32[1]{0}', space=sflag, size = 0x4, scoped, tag = 'scoped memory for tpu_custom_call.1']
    #allocation7 [shape = 'u8[65536]{0}', space=vmem, size = 0x10000, scoped, tag = 'input window, operand 5, single buffered']
    #allocation8 [shape = 'u8[4096]{0}', space=vmem, size = 0x1000, scoped, tag = 'output window, operand 0, single buffered']
    %12 = vsyncpa [#allocation3], 0
    %13 = vsyncpa [#allocation6], 0
    %14 = vsyncpa [#allocation4], 0
    // Predicated region
    $region2: #{tpu_custom_call.1} parent=1 // pred_check
      _
    $region3: #{tpu_custom_call.1} parent=1 // pred_check_branch
      %16 = sbr.rel (0) target = $region5
    $region4: #{tpu_custom_call.1} parent=1 // pred_region
      _
    $region5: #{tpu_custom_call.1} parent=1 // pred_fallthru
      _
    // Predicated region
    $region6: #{tpu_custom_call.1} parent=1 // pred_check
      _
    $region7: #{tpu_custom_call.1} parent=1 // pred_check_branch
      %18 = sbr.rel (0) target = $region9
    $region8: #{tpu_custom_call.1} parent=1 // pred_region
      _
    $region9: #{tpu_custom_call.1} parent=1 // pred_fallthru
      _
    // Predicated region
    $region10: #{tpu_custom_call.1} parent=1 // pred_check
      _
    $region11: #{tpu_custom_call.1} parent=1 // pred_check_branch
      %20 = sbr.rel (0) target = $region13
    $region12: #{tpu_custom_call.1} parent=1 // pred_region
      %s22 = ssub.s32 512, 512
      %23 = vsyncadd [#allocation3], %s22
      %s24 = sshll.u32 [#allocation2], 4
      %s25 = int_to_ptr.vmem [resolvable:$true] %s24
      %30 = dma.hbm_to_vmem [thread:$0]  %s2, 512, %s25, [#allocation3], 128, 128, 8
    $region13: #{tpu_custom_call.1} parent=1 // pred_fallthru
      _
    // Predicated region
    $region14: #{tpu_custom_call.1} parent=1 // pred_check
      _
    $region15: #{tpu_custom_call.1} parent=1 // pred_check_branch
      %32 = sbr.rel (0) target = $region17
    $region16: #{tpu_custom_call.1} parent=1 // pred_region
      %s34 = ssub.s32 512, 512
      %35 = vsyncadd [#allocation6], %s34
      %s36 = sshll.u32 [#allocation5], 4
      %s37 = int_to_ptr.vmem [resolvable:$true] %s36
      %42 = dma.hbm_to_vmem [thread:$0]  %s3, 512, %s37, [#allocation6], 128, 128, 8
    $region17: #{tpu_custom_call.1} parent=1 // pred_fallthru
      _
    // Predicated region
    $region18: #{tpu_custom_call.1} parent=1 // pred_check
      _
    $region19: #{tpu_custom_call.1} parent=1 // pred_check_branch
      %44 = sbr.rel (0) target = $region21
    $region20: #{tpu_custom_call.1} parent=1 // pred_region
      _
    $region21: #{tpu_custom_call.1} parent=1 // pred_fallthru
      _
    // Predicated region
    $region22: #{tpu_custom_call.1} parent=1 // pred_check
      _
    $region23: #{tpu_custom_call.1} parent=1 // pred_check_branch
      %46 = sbr.rel (0) target = $region25
    $region24: #{tpu_custom_call.1} parent=1 // pred_region
      %s48 = ssub.s32 2048, 2048
      %49 = vsyncadd [#allocation6], %s48
      %s50 = sshll.u32 [#allocation7], 4
      %s51 = int_to_ptr.vmem [resolvable:$true] %s50
      %56 = dma.hbm_to_vmem [thread:$0]  %s5, 2048, %s51, [#allocation6], 128, 128, 8
    $region25: #{tpu_custom_call.1} parent=1 // pred_fallthru
      _
    // Predicated region
    $region26: #{tpu_custom_call.1} parent=1 // pred_check
      _
    $region27: #{tpu_custom_call.1} parent=1 // pred_check_branch
      %58 = sbr.rel (0) target = $region29
    $region28: #{tpu_custom_call.1} parent=1 // pred_region
      _
    $region29: #{tpu_custom_call.1} parent=1 // pred_fallthru
      _
    // Predicated region
    $region30: #{tpu_custom_call.1} parent=1 // pred_check
      _
    $region31: #{tpu_custom_call.1} parent=1 // pred_check_branch
      %60 = sbr.rel (0) target = $region33
    $region32: #{tpu_custom_call.1} parent=1 // pred_region
      %61 = dma.done [#allocation3], 512
    $region33: #{tpu_custom_call.1} parent=1 // pred_fallthru
      _
    // Predicated region
    $region34: #{tpu_custom_call.1} parent=1 // pred_check
      _
    $region35: #{tpu_custom_call.1} parent=1 // pred_check_branch
      %63 = sbr.rel (0) target = $region37
    $region36: #{tpu_custom_call.1} parent=1 // pred_region
      %64 = dma.done [#allocation6], 512
    $region37: #{tpu_custom_call.1} parent=1 // pred_fallthru
      _
    // Predicated region
    $region38: #{tpu_custom_call.1} parent=1 // pred_check
      _
    $region39: #{tpu_custom_call.1} parent=1 // pred_check_branch
      %66 = sbr.rel (0) target = $region41
    $region40: #{tpu_custom_call.1} parent=1 // pred_region
      %67 = dma.done [#allocation6], 2048
    $region41: #{tpu_custom_call.1} parent=1 // pred_fallthru
      _
    %v68 = vld [vmem:[%s0] sm:$0xff]
    %v69 = vld [vmem:[%s1] sm:$0x1]
    %71 = vset.pattern.permute.xlu0 0
    %72 = vperm.xlu0 %71, %v68
    %v73 = vpop.permute.xlu0 %72
    %v76 = vlaneseq
    %v77 = vshrl.u32 %v76, 7
    %v78 = vsub.s32 0, %v77
    %v79 = vrot.slane %v69, %v78
    %v81 = vmul.f32 %v73, %v79
    %v82 = vand.u32 2147483647, %v81
    %vm83 = vcmp.le.f32.partialorder %v82, 0.7853982
    %vm84 = vcmp.lt.s32.totalorder %v81, 0
    %v85 = vand.u32 %v81, 2139095040
    %v86 = vshrl.u32 %v85, 23
    %v87 = vsub.s32 %v86, 127
    %v88 = vand.u32 2147483647, %v81
    %v89 = vand.u32 %v88, 8388607
    %v90 = vor.u32 %v89, 8388608
    %v91 = vsub.s32 0, %v90
    %v92 = vadd.s32 %v87, 1
    %vm93 = vcmp.gt.s32.totalorder %v92, 0
    %v94 = vsel %vm93, %v92, 0
    %v95 = vshrl.u32 %v94, 5
    %v96 = vand.u32 %v94, 31
    %v97 = vsub.s32 32, %v96
    %v98 = vshrl.u32 683565275, %v97
    %v99 = vshll.u32 683565275, %v96
    %v100 = vshrl.u32 2475754826, %v97
    %v101 = vor.u32 %v99, %v100
    %v102 = vshll.u32 2475754826, %v96
    %v103 = vshrl.u32 2131351028, %v97
    %v104 = vor.u32 %v102, %v103
    %v105 = vshll.u32 2131351028, %v96
    %v106 = vshrl.u32 2102212464, %v97
    %v107 = vor.u32 %v105, %v106
    %v108 = vshll.u32 2102212464, %v96
    %v109 = vshrl.u32 920167782, %v97
    %v110 = vor.u32 %v108, %v109
    %v111 = vshll.u32 920167782, %v96
    %v112 = vshrl.u32 1326507024, %v97
    %v113 = vor.u32 %v111, %v112
    %vm114 = vcmp.lt.s32.totalorder %v95, 1
    %vm115 = vcmp.lt.s32.totalorder %v95, 2
    %vm116 = vcmp.lt.s32.totalorder %v95, 3
    %vm117 = vcmp.lt.s32.totalorder %v95, 4
    %v118 = vsel %vm114, %v98, %v101
    %v119 = vsel %vm117, %v107, 2102212464
    %v120 = vsel %vm116, %v104, %v119
    %v121 = vsel %vm115, %v118, %v120
    %v122 = vsel %vm114, %v101, %v104
    %v123 = vsel %vm117, %v110, 920167782
    %v124 = vsel %vm116, %v107, %v123
    %v125 = vsel %vm115, %v122, %v124
    %v126 = vsel %vm114, %v104, %v107
    %v127 = vsel %vm117, %v113, 1326507024
    %v128 = vsel %vm116, %v110, %v127
    %v129 = vsel %vm115, %v126, %v128
    %v130 = vshll.u32 %v90, 8
    %v131 = vmul.u32.u64.compose %v130, %v129
    %v132 = vextract.low.u32 %v131
    %v133 = vextract.high.u32 %v131
    %v134 = vmul.u32.u64.compose %v130, %v125
    %v135 = vextract.low.u32 %v134
    %v136 = vextract.high.u32 %v134
    %v137 = vmul.u32 %v130, %v121
    %v138 = vadd.s32 %v133, %v135
    %vm139 = vc.u32 %v133, %v135
    %v140 = vadd.s32 %v136, 1
    %v141 = vsel %vm139, %v140, %v136
    %v142 = vadd.s32 %v137, %v141
    %v143 = vadd.s32 %v142, 536870912
    %v144 = vshrl.u32 %v143, 30
    %v145 = vshll.u32 %v144, 30
    %v146 = vsub.s32 %v142, %v145
    %vm147 = vcmp.lt.s32.totalorder %v146, 0
    %v148 = vsub.s32 0, %v146
    %v149 = vsel %vm147, %v148, %v146
    %v150 = vclz %v149
    %v151 = vsub.s32 %v150, 2
    %vm152 = vcmp.gt.s32.totalorder 0, %v151
    %v153 = vsel %vm152, 0, %v151
    %v154 = vsub.s32 32, %v153
    %v155 = vshll.u32 %v146, %v153
    %v156 = vshrl.u32 %v138, %v154
    %v157 = vor.u32 %v155, %v156
    %v158 = vsub.s32 4294967266, %v153
    %v159 = vadd.s32 %v158, 127
    %v160 = vshll.u32 %v159, 23
    %v161 = vor.u32 4788187, %v160
    %v162 = vand.u32 2147483647, %v161
    %v164 = vcvt.s32.f32 %v157
    %v165 = vmul.f32 %v164, %v162
    %v166 = vxor.u32 %v165, 2147483648
    %v167 = vsel %vm84, %v166, %v165
    %v168 = vsub.s32 4, %v144
    %v169 = vsel %vm84, %v168, %v144
    %v170 = vsel %vm83, %v81, %v167
    %v171 = vsel %vm83, 0, %v169
    %v172 = vcosq.f32.pop %v170
    %v173 = vsinq.f32.pop %v170
    %vm174 = vweird.f32 %v81
    %v175 = vadd.s32 %v171, 3
    %v176 = vand.u32 %v175, 3
    %vm177 = vcmp.lt.s32.totalorder %v176, 2
    %vm178 = vcmp.eq.s32.totalorder %v176, 0
    %v179 = vxor.u32 %v173, 2147483648
    %v180 = vsel %vm178, %v172, %v179
    %vm181 = vcmp.eq.s32.totalorder %v176, 2
    %v182 = vxor.u32 %v172, 2147483648
    %v183 = vsel %vm181, %v182, %v173
    %v184 = vsel %vm177, %v180, %v183
    %v185 = vsel %vm174, nan, %v184
    %v186 = vand.u32 2147483647, %v81
    %vm187 = vcmp.le.f32.partialorder %v186, 0.7853982
    %vm188 = vcmp.lt.s32.totalorder %v81, 0
    %v189 = vand.u32 %v81, 2139095040
    %v190 = vshrl.u32 %v189, 23
    %v191 = vsub.s32 %v190, 127
    %v192 = vand.u32 2147483647, %v81
    %v193 = vand.u32 %v192, 8388607
    %v194 = vor.u32 %v193, 8388608
    %v195 = vsub.s32 0, %v194
    %v196 = vadd.s32 %v191, 1
    %vm197 = vcmp.gt.s32.totalorder %v196, 0
    %v198 = vsel %vm197, %v196, 0
    %v199 = vshrl.u32 %v198, 5
    %v200 = vand.u32 %v198, 31
    %v201 = vsub.s32 32, %v200
    %v202 = vshrl.u32 683565275, %v201
    %v203 = vshll.u32 683565275, %v200
    %v204 = vshrl.u32 2475754826, %v201
    %v205 = vor.u32 %v203, %v204
    %v206 = vshll.u32 2475754826, %v200
    %v207 = vshrl.u32 2131351028, %v201
    %v208 = vor.u32 %v206, %v207
    %v209 = vshll.u32 2131351028, %v200
    %v210 = vshrl.u32 2102212464, %v201
    %v211 = vor.u32 %v209, %v210
    %v212 = vshll.u32 2102212464, %v200
    %v213 = vshrl.u32 920167782, %v201
    %v214 = vor.u32 %v212, %v213
    %v215 = vshll.u32 920167782, %v200
    %v216 = vshrl.u32 1326507024, %v201
    %v217 = vor.u32 %v215, %v216
    %vm218 = vcmp.lt.s32.totalorder %v199, 1
    %vm219 = vcmp.lt.s32.totalorder %v199, 2
    %vm220 = vcmp.lt.s32.totalorder %v199, 3
    %vm221 = vcmp.lt.s32.totalorder %v199, 4
    %v222 = vsel %vm218, %v202, %v205
    %v223 = vsel %vm221, %v211, 2102212464
    %v224 = vsel %vm220, %v208, %v223
    %v225 = vsel %vm219, %v222, %v224
    %v226 = vsel %vm218, %v205, %v208
    %v227 = vsel %vm221, %v214, 920167782
    %v228 = vsel %vm220, %v211, %v227
    %v229 = vsel %vm219, %v226, %v228
    %v230 = vsel %vm218, %v208, %v211
    %v231 = vsel %vm221, %v217, 1326507024
    %v232 = vsel %vm220, %v214, %v231
    %v233 = vsel %vm219, %v230, %v232
    %v234 = vshll.u32 %v194, 8
    %v235 = vmul.u32.u64.compose %v234, %v233
    %v236 = vextract.low.u32 %v235
    %v237 = vextract.high.u32 %v235
    %v238 = vmul.u32.u64.compose %v234, %v229
    %v239 = vextract.low.u32 %v238
    %v240 = vextract.high.u32 %v238
    %v241 = vmul.u32 %v234, %v225
    %v242 = vadd.s32 %v237, %v239
    %vm243 = vc.u32 %v237, %v239
    %v244 = vadd.s32 %v240, 1
    %v245 = vsel %vm243, %v244, %v240
    %v246 = vadd.s32 %v241, %v245
    %v247 = vadd.s32 %v246, 536870912
    %v248 = vshrl.u32 %v247, 30
    %v249 = vshll.u32 %v248, 30
    %v250 = vsub.s32 %v246, %v249
    %vm251 = vcmp.lt.s32.totalorder %v250, 0
    %v252 = vsub.s32 0, %v250
    %v253 = vsel %vm251, %v252, %v250
    %v254 = vclz %v253
    %v255 = vsub.s32 %v254, 2
    %vm256 = vcmp.gt.s32.totalorder 0, %v255
    %v257 = vsel %vm256, 0, %v255
    %v258 = vsub.s32 32, %v257
    %v259 = vshll.u32 %v250, %v257
    %v260 = vshrl.u32 %v242, %v258
    %v261 = vor.u32 %v259, %v260
    %v262 = vsub.s32 4294967266, %v257
    %v263 = vadd.s32 %v262, 127
    %v264 = vshll.u32 %v263, 23
    %v265 = vor.u32 4788187, %v264
    %v266 = vand.u32 2147483647, %v265
    %v268 = vcvt.s32.f32 %v261
    %v269 = vmul.f32 %v268, %v266
    %v270 = vxor.u32 %v269, 2147483648
    %v271 = vsel %vm188, %v270, %v269
    %v272 = vsub.s32 4, %v248
    %v273 = vsel %vm188, %v272, %v248
    %v274 = vsel %vm187, %v81, %v271
    %v275 = vsel %vm187, 0, %v273
    %v276 = vcosq.f32.pop %v274
    %v277 = vsinq.f32.pop %v274
    %vm278 = vweird.f32 %v81
    %v279 = vand.u32 %v275, 3
    %vm280 = vcmp.lt.s32.totalorder %v279, 2
    %vm281 = vcmp.eq.s32.totalorder %v279, 0
    %v282 = vxor.u32 %v277, 2147483648
    %v283 = vsel %vm281, %v276, %v282
    %vm284 = vcmp.eq.s32.totalorder %v279, 2
    %v285 = vxor.u32 %v276, 2147483648
    %v286 = vsel %vm284, %v285, %v277
    %v287 = vsel %vm280, %v283, %v286
    %v288 = vsel %vm278, nan, %v287
    %v289 = vld [vmem:[#allocation2] sm:$0xff]
    %v290 = vld [vmem:[#allocation2 + $0x8] sm:$0xff]
    %v291 = vld [vmem:[#allocation2 + $0x10] sm:$0xff]
    %v292 = vld [vmem:[#allocation2 + $0x18] sm:$0xff]
    %v293 = vld [vmem:[#allocation5] sm:$0xff]
    %v294 = vld [vmem:[#allocation5 + $0x8] sm:$0xff]
    %v295 = vld [vmem:[#allocation5 + $0x10] sm:$0xff]
    %v296 = vld [vmem:[#allocation5 + $0x18] sm:$0xff]
    %vm297 = vcmask 261120
    %v299 = vsel %vm297, %v288, 0
    %301 = vmatprep.subr.mxu0 0.0
    %302 = vmatpush1.msra.mxu0 %v293
    %303 = vmatprep.subr.mxu0 0.0
    %304 = vmatpush1.msra.mxu0 %v294
    %305 = vmatprep.subr.mxu0 0.0
    %306 = vmatpush1.msra.mxu0 %v295
    %307 = vmatprep.subr.mxu0 0.0
    %308 = vmatpush1.msra.mxu0 %v296
    %309 = vmatprep.subr.mxu0 0.0
    %310 = vmatpush1.msra.mxu0 0.0
    %311 = vmatprep.subr.mxu0 0.0
    %312 = vmatpush1.msra.mxu0 0.0
    %313 = vmatprep.subr.mxu0 0.0
    %314 = vmatpush1.msra.mxu0 0.0
    %315 = vmatprep.subr.mxu0 0.0
    %316 = vmatpush1.msra.mxu0 0.0
    %317 = vmatprep.subr.mxu0 0.0
    %318 = vmatpush1.msra.mxu0 0.0
    %319 = vmatprep.subr.mxu0 0.0
    %320 = vmatpush1.msra.mxu0 0.0
    %321 = vmatprep.subr.mxu0 0.0
    %322 = vmatpush1.msra.mxu0 0.0
    %323 = vmatprep.subr.mxu0 0.0
    %324 = vmatpush1.msra.mxu0 0.0
    %325 = vmatprep.subr.mxu0 0.0
    %326 = vmatpush1.msra.mxu0 0.0
    %327 = vmatprep.subr.mxu0 0.0
    %328 = vmatpush1.msra.mxu0 0.0
    %329 = vmatprep.subr.mxu0 0.0
    %330 = vmatpush1.msra.mxu0 0.0
    %331 = vmatprep.subr.mxu0 0.0
    %332 = vmatpush1.msra.mxu0 0.0
    %333 = vmatprep.subr.mxu0 0.0
    %334 = vmatpush1.msra.mxu0 0.0
    %335 = vmatprep.subr.mxu0 0.0
    %336 = vmatpush1.msra.mxu0 0.0
    %337 = vmatprep.subr.mxu0 0.0
    %338 = vmatpush1.msra.mxu0 0.0
    %339 = vmatprep.subr.mxu0 0.0
    %340 = vmatpush1.msra.mxu0 0.0
    %341 = vmatprep.subr.mxu0 0.0
    %342 = vmatpush1.msra.mxu0 0.0
    %343 = vmatprep.subr.mxu0 0.0
    %344 = vmatpush1.msra.mxu0 0.0
    %345 = vmatprep.subr.mxu0 0.0
    %346 = vmatpush1.msra.mxu0 0.0
    %347 = vmatprep.subr.mxu0 0.0
    %348 = vmatpush1.msra.mxu0 0.0
    %349 = vmatprep.subr.mxu0 0.0
    %350 = vmatpush1.msra.mxu0 0.0
    %351 = vmatprep.subr.mxu0 0.0
    %352 = vmatpush1.msra.mxu0 0.0
    %353 = vmatprep.subr.mxu0 0.0
    %354 = vmatpush1.msra.mxu0 0.0
    %355 = vmatprep.subr.mxu0 0.0
    %356 = vmatpush1.msra.mxu0 0.0
    %357 = vmatprep.subr.mxu0 0.0
    %358 = vmatpush1.msra.mxu0 0.0
    %359 = vmatprep.subr.mxu0 0.0
    %360 = vmatpush1.msra.mxu0 0.0
    %361 = vmatprep.subr.mxu0 0.0
    %362 = vmatpush1.msra.mxu0 0.0
    %363 = vmatprep.subr.mxu0 0.0
    %364 = vmatpush1.msra.mxu0 0.0
    %365 = vmatprep.mubr.f32.mxu0 0.0
    %366 = vmatmul.mubr.f32.gmra.mrb[0].mxu0 %v299
    %v367 = vpop.f32.mrb[0].mxu0
    %v368 = vadd.f32 0.0, %v367
    %v369 = vpop.f32.mrb[0].mxu0
    %370 = vdwg.mxu0
    %v372 = vsel %vm297, %v185, 0
    %374 = vmatprep.subr.mxu0 0.0
    %375 = vmatpush1.msra.mxu0 %v289
    %376 = vmatprep.subr.mxu0 0.0
    %377 = vmatpush1.msra.mxu0 %v290
    %378 = vmatprep.subr.mxu0 0.0
    %379 = vmatpush1.msra.mxu0 %v291
    %380 = vmatprep.subr.mxu0 0.0
    %381 = vmatpush1.msra.mxu0 %v292
    %382 = vmatprep.subr.mxu0 0.0
    %383 = vmatpush1.msra.mxu0 0.0
    %384 = vmatprep.subr.mxu0 0.0
    %385 = vmatpush1.msra.mxu0 0.0
    %386 = vmatprep.subr.mxu0 0.0
    %387 = vmatpush1.msra.mxu0 0.0
    %388 = vmatprep.subr.mxu0 0.0
    %389 = vmatpush1.msra.mxu0 0.0
    %390 = vmatprep.subr.mxu0 0.0
    %391 = vmatpush1.msra.mxu0 0.0
    %392 = vmatprep.subr.mxu0 0.0
    %393 = vmatpush1.msra.mxu0 0.0
    %394 = vmatprep.subr.mxu0 0.0
    %395 = vmatpush1.msra.mxu0 0.0
    %396 = vmatprep.subr.mxu0 0.0
    %397 = vmatpush1.msra.mxu0 0.0
    %398 = vmatprep.subr.mxu0 0.0
    %399 = vmatpush1.msra.mxu0 0.0
    %400 = vmatprep.subr.mxu0 0.0
    %401 = vmatpush1.msra.mxu0 0.0
    %402 = vmatprep.subr.mxu0 0.0
    %403 = vmatpush1.msra.mxu0 0.0
    %404 = vmatprep.subr.mxu0 0.0
    %405 = vmatpush1.msra.mxu0 0.0
    %406 = vmatprep.subr.mxu0 0.0
    %407 = vmatpush1.msra.mxu0 0.0
    %408 = vmatprep.subr.mxu0 0.0
    %409 = vmatpush1.msra.mxu0 0.0
    %410 = vmatprep.subr.mxu0 0.0
    %411 = vmatpush1.msra.mxu0 0.0
    %412 = vmatprep.subr.mxu0 0.0
    %413 = vmatpush1.msra.mxu0 0.0
    %414 = vmatprep.subr.mxu0 0.0
    %415 = vmatpush1.msra.mxu0 0.0
    %416 = vmatprep.subr.mxu0 0.0
    %417 = vmatpush1.msra.mxu0 0.0
    %418 = vmatprep.subr.mxu0 0.0
    %419 = vmatpush1.msra.mxu0 0.0
    %420 = vmatprep.subr.mxu0 0.0
    %421 = vmatpush1.msra.mxu0 0.0
    %422 = vmatprep.subr.mxu0 0.0
    %423 = vmatpush1.msra.mxu0 0.0
    %424 = vmatprep.subr.mxu0 0.0
    %425 = vmatpush1.msra.mxu0 0.0
    %426 = vmatprep.subr.mxu0 0.0
    %427 = vmatpush1.msra.mxu0 0.0
    %428 = vmatprep.subr.mxu0 0.0
    %429 = vmatpush1.msra.mxu0 0.0
    %430 = vmatprep.subr.mxu0 0.0
    %431 = vmatpush1.msra.mxu0 0.0
    %432 = vmatprep.subr.mxu0 0.0
    %433 = vmatpush1.msra.mxu0 0.0
    %434 = vmatprep.subr.mxu0 0.0
    %435 = vmatpush1.msra.mxu0 0.0
    %436 = vmatprep.subr.mxu0 0.0
    %437 = vmatpush1.msra.mxu0 0.0
    %438 = vmatprep.mubr.f32.mxu0 0.0
    %439 = vmatmul.mubr.f32.gmra.mrb[0].mxu0 %v372
    %v440 = vpop.f32.mrb[0].mxu0
    %v441 = vadd.f32 %v368, %v440
    %v442 = vpop.f32.mrb[0].mxu0
    %443 = vdwg.mxu0
    %v444 = vld [vmem:[%s4] sm:$0x1]
    %v446 = vlaneseq
    %v447 = vshrl.u32 %v446, 7
    %v448 = vsub.s32 0, %v447
    %v449 = vrot.slane %v444, %v448
    %v451 = vadd.f32 %v441, %v449
    %v452 = vmax.f32 %v451, 0.0
    %v453 = vld [vmem:[#allocation7] sm:$0xff]
    %v454 = vld [vmem:[#allocation7 + $0x8] sm:$0xff]
    %v455 = vld [vmem:[#allocation7 + $0x10] sm:$0xff]
    %v456 = vld [vmem:[#allocation7 + $0x18] sm:$0xff]
    %v457 = vld [vmem:[#allocation7 + $0x20] sm:$0xff]
    %v458 = vld [vmem:[#allocation7 + $0x28] sm:$0xff]
    %v459 = vld [vmem:[#allocation7 + $0x30] sm:$0xff]
    %v460 = vld [vmem:[#allocation7 + $0x38] sm:$0xff]
    %v461 = vld [vmem:[#allocation7 + $0x40] sm:$0xff]
    %v462 = vld [vmem:[#allocation7 + $0x48] sm:$0xff]
    %v463 = vld [vmem:[#allocation7 + $0x50] sm:$0xff]
    %v464 = vld [vmem:[#allocation7 + $0x58] sm:$0xff]
    %v465 = vld [vmem:[#allocation7 + $0x60] sm:$0xff]
    %v466 = vld [vmem:[#allocation7 + $0x68] sm:$0xff]
    %v467 = vld [vmem:[#allocation7 + $0x70] sm:$0xff]
    %v468 = vld [vmem:[#allocation7 + $0x78] sm:$0xff]
    %v469 = vld [vmem:[%s6] sm:$0x1]
    %v471 = vlaneseq
    %v472 = vshrl.u32 %v471, 7
    %v473 = vsub.s32 0, %v472
    %v474 = vrot.slane %v469, %v473
    %476 = vmatprep.subr.mxu0 0.0
    %477 = vmatpush1.msra.mxu0 %v453
    %478 = vmatprep.subr.mxu0 0.0
    %479 = vmatpush1.msra.mxu0 %v454
    %480 = vmatprep.subr.mxu0 0.0
    %481 = vmatpush1.msra.mxu0 %v455
    %482 = vmatprep.subr.mxu0 0.0
    %483 = vmatpush1.msra.mxu0 %v456
    %484 = vmatprep.subr.mxu0 0.0
    %485 = vmatpush1.msra.mxu0 %v457
    %486 = vmatprep.subr.mxu0 0.0
    %487 = vmatpush1.msra.mxu0 %v458
    %488 = vmatprep.subr.mxu0 0.0
    %489 = vmatpush1.msra.mxu0 %v459
    %490 = vmatprep.subr.mxu0 0.0
    %491 = vmatpush1.msra.mxu0 %v460
    %492 = vmatprep.subr.mxu0 0.0
    %493 = vmatpush1.msra.mxu0 %v461
    %494 = vmatprep.subr.mxu0 0.0
    %495 = vmatpush1.msra.mxu0 %v462
    %496 = vmatprep.subr.mxu0 0.0
    %497 = vmatpush1.msra.mxu0 %v463
    %498 = vmatprep.subr.mxu0 0.0
    %499 = vmatpush1.msra.mxu0 %v464
    %500 = vmatprep.subr.mxu0 0.0
    %501 = vmatpush1.msra.mxu0 %v465
    %502 = vmatprep.subr.mxu0 0.0
    %503 = vmatpush1.msra.mxu0 %v466
    %504 = vmatprep.subr.mxu0 0.0
    %505 = vmatpush1.msra.mxu0 %v467
    %506 = vmatprep.subr.mxu0 0.0
    %507 = vmatpush1.msra.mxu0 %v468
    %508 = vmatprep.subr.mxu0 0.0
    %509 = vmatpush1.msra.mxu0 0.0
    %510 = vmatprep.subr.mxu0 0.0
    %511 = vmatpush1.msra.mxu0 0.0
    %512 = vmatprep.subr.mxu0 0.0
    %513 = vmatpush1.msra.mxu0 0.0
    %514 = vmatprep.subr.mxu0 0.0
    %515 = vmatpush1.msra.mxu0 0.0
    %516 = vmatprep.subr.mxu0 0.0
    %517 = vmatpush1.msra.mxu0 0.0
    %518 = vmatprep.subr.mxu0 0.0
    %519 = vmatpush1.msra.mxu0 0.0
    %520 = vmatprep.subr.mxu0 0.0
    %521 = vmatpush1.msra.mxu0 0.0
    %522 = vmatprep.subr.mxu0 0.0
    %523 = vmatpush1.msra.mxu0 0.0
    %524 = vmatprep.subr.mxu0 0.0
    %525 = vmatpush1.msra.mxu0 0.0
    %526 = vmatprep.subr.mxu0 0.0
    %527 = vmatpush1.msra.mxu0 0.0
    %528 = vmatprep.subr.mxu0 0.0
    %529 = vmatpush1.msra.mxu0 0.0
    %530 = vmatprep.subr.mxu0 0.0
    %531 = vmatpush1.msra.mxu0 0.0
    %532 = vmatprep.subr.mxu0 0.0
    %533 = vmatpush1.msra.mxu0 0.0
    %534 = vmatprep.subr.mxu0 0.0
    %535 = vmatpush1.msra.mxu0 0.0
    %536 = vmatprep.subr.mxu0 0.0
    %537 = vmatpush1.msra.mxu0 0.0
    %538 = vmatprep.subr.mxu0 0.0
    %539 = vmatpush1.msra.mxu0 0.0
    %540 = vmatprep.mubr.f32.mxu0 0.0
    %541 = vmatmul.mubr.f32.gmra.mrb[0].mxu0 %v452
    %v542 = vpop.f32.mrb[0].mxu0
    %v543 = vadd.f32 %v474, %v542
    %v544 = vpop.f32.mrb[0].mxu0
    %545 = vdwg.mxu0
    %v546 = vmax.f32 %v543, 0.0
    %547 = vst [vmem:[#allocation8] sm:$0xff] %v546
    // Predicated region
    $region42: #{tpu_custom_call.1} parent=1 // pred_check
      _
    $region43: #{tpu_custom_call.1} parent=1 // pred_check_branch
      %549 = sbr.rel (0) target = $region45
    $region44: #{tpu_custom_call.1} parent=1 // pred_region
      %s551 = ssub.s32 128, 128
      %552 = vsyncadd [#allocation4], %s551
      %s554 = sshll.u32 [#allocation8], 4
      %s555 = int_to_ptr.vmem [resolvable:$true] %s554
      %557 = dma.vmem_to_hbm [thread:$0]  %s555, 128, %s7, [#allocation4]
    $region45: #{tpu_custom_call.1} parent=1 // pred_fallthru
      _
    // Predicated region
    $region46: #{tpu_custom_call.1} parent=1 // pred_check
      _
    $region47: #{tpu_custom_call.1} parent=1 // pred_check_branch
      %559 = sbr.rel (0) target = $region49
    $region48: #{tpu_custom_call.1} parent=1 // pred_region
      %560 = dma.done [#allocation4], 128
    $region49: #{tpu_custom_call.1} parent=1 // pred_fallthru
      _
    %561 = vsyncpa [#allocation3], 1
    %562 = vsyncpa [#allocation6], 1
    %563 = vsyncpa [#allocation4], 1

</llo_original>
